<compile_context>
chip_gen: v7x
topology: tpu7x:2x2x1
jax: 0.10.0
libtpu: 0.0.40
codegen_flags: <defaults>
</compile_context>

<pallas_src>
import functools

import jax
import jax.numpy as jnp
from jax.experimental import pallas as pl
from jax.experimental.pallas import tpu as pltpu


# --------------------------------------------------------------------------
# Hardware-aware sizing helpers
# --------------------------------------------------------------------------

def _round_up(n, m):
    return ((n + m - 1) // m) * m


def _padded_x_block_bytes(tb, C, HW, dtype):
    """Footprint of ONE (tb, C, HW) tile after Mosaic tiling/padding:
    lane dim (HW) rounds to 128, sublane dim (C) rounds to 8 for 32-bit,
    16 for 16-bit, 32 for 8-bit dtypes."""
    itemsize = jnp.dtype(dtype).itemsize
    sublane = 8 * max(1, 4 // itemsize)
    c_pad = _round_up(C, sublane)
    hw_pad = _round_up(HW, 128)
    return tb * c_pad * hw_pad * itemsize


def _tpu_defaults():
    """Per-generation block budget (for ONE padded x block; real VMEM use is
    ~4x that: double-buffered x in + double-buffered out) and VMEM limit."""
    kind = ""
    try:
        kind = jax.devices()[0].device_kind.lower()
    except Exception:
        pass
    if ("v5e" in kind) or ("v5 lite" in kind) or ("v5lite" in kind) or ("v6" in kind):
        # Single TensorCore, 128 MiB physical VMEM: bigger blocks, no need for
        # multiple grid steps; explicit limit is mandatory on v5e (16 MiB
        # scoped default) and cheap headroom on v6e.
        return dict(x_block_budget=20 << 20, vmem_limit=100 << 20,
                    prefer_even_grid=False, min_grid_steps=1)
    # v7x (64 MiB VMEM, 2 TensorCores) or unknown: conservative sizing, and
    # prefer an even grid so the "parallel" axis splits evenly across cores.
    return dict(x_block_budget=8 << 20, vmem_limit=48 << 20,
                prefer_even_grid=True, min_grid_steps=2)


def _choose_tb(B, C, HW, dtype, *, budget, prefer_even_grid, min_grid_steps):
    """Pick the batch tile TB for the fused path, or None if even TB=1 blows
    the padded-block budget (caller then uses the spatial fallback).
    Preference order: even grid (v7x core balance) > TB multiple of 8 or full
    B (sublane-friendly y write-back, fuller MXU M) > largest TB."""
    candidates = []
    for tb in range(1, B + 1):
        if B % tb:
            continue
        steps = B // tb
        if B >= min_grid_steps and steps < min_grid_steps:
            continue
        if _padded_x_block_bytes(tb, C, HW, dtype) > budget:
            continue
        score = (
            1 if (not prefer_even_grid or steps % 2 == 0) else 0,
            1 if (tb % 8 == 0 or tb == B) else 0,
            tb,
        )
        candidates.append((score, tb))
    if not candidates:
        return None
    return max(candidates)[1]


def _choose_spatial_tile(C, HW, dtype, *, budget):
    """Largest divisor of HW whose padded (1, C, thw) block fits the budget
    (divisor => the pooled-sum reduction needs no masking)."""
    best = 1
    for thw in range(1, HW + 1):
        if HW % thw:
            continue
        if _padded_x_block_bytes(1, C, thw, dtype) <= budget:
            best = thw
    return best


# --------------------------------------------------------------------------
# Fused single-pass kernel (normal case)
# --------------------------------------------------------------------------

def se_block_kernel(x_ref, w1_ref, w2_ref, out_ref, y_ref):
    # x_ref:   (TB, C, HW)  spatial on lanes, channels on sublanes
    # w1_ref:  (C, C_hid)   stored (in, out)
    # w2_ref:  (C_hid, C)
    # out_ref: (TB, C, HW)
    # y_ref:   (TB, 1, C)   gate (C on lanes; sublane dim is full => no (8,128) strain)

    # Pool straight off the ref.  Do NOT keep the multi-MiB tile value live
    # across the FC chain: it cannot sit in 64 vregs and would force an extra
    # full-tile VMEM scratch copy.  The scale line re-reads x_ref instead.
    pooled = jnp.mean(x_ref[...], axis=-1, dtype=jnp.float32)        # (TB, C) f32

    w1 = w1_ref[...]
    hidden = jnp.dot(pooled.astype(w1.dtype), w1,
                     preferred_element_type=jnp.float32)             # (TB, C_hid)
    hidden = jnp.maximum(hidden, 0.0)

    w2 = w2_ref[...]
    y = jax.nn.sigmoid(jnp.dot(hidden.astype(w2.dtype), w2,
                               preferred_element_type=jnp.float32))  # (TB, C) f32

    # Gate multiply in the input dtype (VPU-native, no f32 copy of the tile).
    # Exact for f32 inputs; for bf16 inputs this matches a bf16 torch module.
    gate = y.astype(x_ref.dtype)[:, :, None]                         # (TB, C, 1)
    out_ref[...] = (x_ref[...] * gate).astype(out_ref.dtype)
    y_ref[...] = y[:, None, :].astype(y_ref.dtype)


def _se_block_fused(x_flat, w1, w2, *, tb, vmem_limit, donate_x):
    B, C, HW = x_flat.shape
    C_hid = w1.shape[1]
    dtype = x_flat.dtype

    kwargs = {}
    if donate_x:
        kwargs["input_output_aliases"] = {0: 0}  # out aliases x (1R+1W floor unchanged)

    out_flat, y_b1c = pl.pallas_call(
        se_block_kernel,
        out_shape=(
            jax.ShapeDtypeStruct((B, C, HW), dtype),
            jax.ShapeDtypeStruct((B, 1, C), dtype),
        ),
        grid_spec=pltpu.PrefetchScalarGridSpec(
            num_scalar_prefetch=0,
            grid=(B // tb,),
            in_specs=[
                pl.BlockSpec((tb, C, HW), lambda b: (b, 0, 0)),
                pl.BlockSpec((C, C_hid), lambda b: (0, 0)),
                pl.BlockSpec((C_hid, C), lambda b: (0, 0)),
            ],
            out_specs=[
                pl.BlockSpec((tb, C, HW), lambda b: (b, 0, 0)),
                pl.BlockSpec((tb, 1, C), lambda b: (b, 0, 0)),
            ],
        ),
        compiler_params=pltpu.CompilerParams(
            dimension_semantics=("parallel",),
            vmem_limit_bytes=vmem_limit,
        ),
        **kwargs,
    )(x_flat, w1, w2)
    return out_flat, y_b1c


# --------------------------------------------------------------------------
# Spatially tiled two-pass fallback (large feature maps)
# --------------------------------------------------------------------------

def se_pool_gate_kernel(x_ref, w1_ref, w2_ref, y_ref, acc_ref, *, inv_hw):
    # Pass 1: accumulate per-channel sums over spatial tiles (arbitrary axis),
    # finalize into the sigmoid gate on the last tile.
    s = pl.program_id(1)

    @pl.when(s == 0)
    def _init():
        acc_ref[...] = jnp.zeros_like(acc_ref)

    acc_ref[...] += jnp.sum(x_ref[...], axis=-1, dtype=jnp.float32)   # (1, C)

    @pl.when(s == pl.num_programs(1) - 1)
    def _finalize():
        pooled = acc_ref[...] * inv_hw                                # (1, C) f32
        w1 = w1_ref[...]
        hidden = jnp.maximum(jnp.dot(pooled.astype(w1.dtype), w1,
                                     preferred_element_type=jnp.float32), 0.0)
        w2 = w2_ref[...]
        y = jax.nn.sigmoid(jnp.dot(hidden.astype(w2.dtype), w2,
                                   preferred_element_type=jnp.float32))
        y_ref[...] = y[:, None, :].astype(y_ref.dtype)


def se_scale_kernel(x_ref, y_ref, out_ref):
    # Pass 2: re-stream x and apply the gate tile-by-tile.
    gate = y_ref[...][:, 0, :, None]                                  # (1, C, 1)
    out_ref[...] = (x_ref[...] * gate.astype(x_ref.dtype)).astype(out_ref.dtype)


def _se_block_spatial(x_flat, w1, w2, *, budget, vmem_limit, donate_x):
    B, C, HW = x_flat.shape
    C_hid = w1.shape[1]
    dtype = x_flat.dtype

    thw = _choose_spatial_tile(C, HW, dtype, budget=budget)
    n_hw = HW // thw

    y_b1c = pl.pallas_call(
        functools.partial(se_pool_gate_kernel, inv_hw=1.0 / HW),
        out_shape=jax.ShapeDtypeStruct((B, 1, C), dtype),
        grid_spec=pltpu.PrefetchScalarGridSpec(
            num_scalar_prefetch=0,
            grid=(B, n_hw),
            in_specs=[
                pl.BlockSpec((1, C, thw), lambda b, s: (b, 0, s)),
                pl.BlockSpec((C, C_hid), lambda b, s: (0, 0)),
                pl.BlockSpec((C_hid, C), lambda b, s: (0, 0)),
            ],
            out_specs=pl.BlockSpec((1, 1, C), lambda b, s: (b, 0, 0)),
            scratch_shapes=[pltpu.VMEM((1, C), jnp.float32)],
        ),
        compiler_params=pltpu.CompilerParams(
            dimension_semantics=("parallel", "arbitrary"),
            vmem_limit_bytes=vmem_limit,
        ),
    )(x_flat, w1, w2)

    kwargs = {}
    if donate_x:
        kwargs["input_output_aliases"] = {0: 0}

    out_flat = pl.pallas_call(
        se_scale_kernel,
        out_shape=jax.ShapeDtypeStruct((B, C, HW), dtype),
        grid_spec=pltpu.PrefetchScalarGridSpec(
            num_scalar_prefetch=0,
            grid=(B, n_hw),
            in_specs=[
                pl.BlockSpec((1, C, thw), lambda b, s: (b, 0, s)),
                pl.BlockSpec((1, 1, C), lambda b, s: (b, 0, 0)),
            ],
            out_specs=pl.BlockSpec((1, C, thw), lambda b, s: (b, 0, s)),
        ),
        compiler_params=pltpu.CompilerParams(
            dimension_semantics=("parallel", "parallel"),
            vmem_limit_bytes=vmem_limit,
        ),
        **kwargs,
    )(x_flat, y_b1c)
    return out_flat, y_b1c


# --------------------------------------------------------------------------
# Public wrapper
# --------------------------------------------------------------------------

def se_block(x_nchw, w1, w2, *, donate_x=False, force_spatial_tiling=False,
             spatial_budget_bytes=None):
    """x_nchw: (B, C, H, W); w1: (C, C//r); w2: (C//r, C).  Weights stored
    (in, out), i.e. transposed relative to torch.nn.Linear, so the kernel does
    plain y @ W.  Returns (x * y, y.reshape(B, C, 1, 1)) like the torch module.
    Set donate_x=True only if the caller no longer needs x (out aliases x)."""
    B, C, H, W = x_nchw.shape
    HW = H * W
    dtype = x_nchw.dtype

    cfg = _tpu_defaults()
    budget = spatial_budget_bytes if spatial_budget_bytes is not None else cfg["x_block_budget"]
    vmem_limit = cfg["vmem_limit"]

    # Free, layout-preserving view; no HBM transpose passes.
    x_flat = x_nchw.reshape(B, C, HW)

    tb = None
    if not force_spatial_tiling:
        tb = _choose_tb(B, C, HW, dtype, budget=budget,
                        prefer_even_grid=cfg["prefer_even_grid"],
                        min_grid_steps=cfg["min_grid_steps"])

    if tb is not None:
        out_flat, y_b1c = _se_block_fused(x_flat, w1, w2, tb=tb,
                                          vmem_limit=vmem_limit, donate_x=donate_x)
    else:
        out_flat, y_b1c = _se_block_spatial(x_flat, w1, w2, budget=budget,
                                            vmem_limit=vmem_limit, donate_x=donate_x)

    return out_flat.reshape(B, C, H, W), y_b1c.reshape(B, C, 1, 1)


def se_block_reference(x_nchw, w1, w2):
    """Pure-JAX reference matching the PyTorch forward."""
    pooled = jnp.mean(x_nchw, axis=(2, 3))                  # (B, C)
    hidden = jnp.maximum(pooled @ w1, 0.0)                  # (B, C//r)
    y = jax.nn.sigmoid(hidden @ w2)                         # (B, C)
    out = x_nchw * y[:, :, None, None]
    return out, y[:, :, None, None]


if __name__ == "__main__":
    # Small shapes consistent with SE_Block(ch_in=64, reduction=16).
    B, C, H, W = 2, 64, 16, 16
    reduction = 16
    C_hid = C // reduction

    key = jax.random.PRNGKey(0)
    kx, k1, k2 = jax.random.split(key, 3)

    x = jax.random.normal(kx, (B, C, H, W), dtype=jnp.float32)
    # Deterministic "Linear" weights (no bias), stored (in, out).
    w1 = jax.random.normal(k1, (C, C_hid), dtype=jnp.float32) * (1.0 / jnp.sqrt(C))
    w2 = jax.random.normal(k2, (C_hid, C), dtype=jnp.float32) * (1.0 / jnp.sqrt(C_hid))

    out_ref, y_ref = se_block_reference(x, w1, w2)

    # Fused single-pass path (normal case).
    out, y = jax.block_until_ready(se_block(x, w1, w2))
    assert out.shape == (B, C, H, W) and y.shape == (B, C, 1, 1)
    assert jnp.allclose(out, out_ref, atol=1e-5, rtol=1e-5)
    assert jnp.allclose(y, y_ref, atol=1e-5, rtol=1e-5)

    # Spatially tiled two-pass fallback (large-feature-map path), forced with
    # a tiny budget so the multi-step pooled reduction is actually exercised.
    out2, y2 = jax.block_until_ready(
        se_block(x, w1, w2, force_spatial_tiling=True,
                 spatial_budget_bytes=40 * 1024))
    assert jnp.allclose(out2, out_ref, atol=1e-5, rtol=1e-5)
    assert jnp.allclose(y2, y_ref, atol=1e-5, rtol=1e-5)

    print("KERNEL_OK")
</pallas_src>

<mosaic_0001>
module attributes {stable_mosaic.version = 11 : i64} {
  func.func @se_block_kernel(%arg0: i32, %arg1: memref<1x64x256xf32, #tpu.memory_space<vmem>>, %arg2: memref<64x4xf32, #tpu.memory_space<vmem>>, %arg3: memref<4x64xf32, #tpu.memory_space<vmem>>, %arg4: memref<1x64x256xf32, #tpu.memory_space<vmem>>, %arg5: memref<1x1x64xf32, #tpu.memory_space<vmem>>) attributes {dimension_semantics = [#tpu.dimension_semantics<parallel>], iteration_bounds = array<i64: 2>, scalar_prefetch = 0 : i64, scratch_operands = 0 : i64, tpu.core_type = #tpu.core_type<tc>, window_params = [{transform_indices = @transform_0, window_bounds = array<i64: 1, 64, 256>}, {pipeline_mode = #tpu.pipeline_mode<synchronous>, transform_indices = @transform_1, window_bounds = array<i64: 64, 4>}, {pipeline_mode = #tpu.pipeline_mode<synchronous>, transform_indices = @transform_2, window_bounds = array<i64: 4, 64>}, {transform_indices = @transform_3, window_bounds = array<i64: 1, 64, 256>}, {transform_indices = @transform_4, window_bounds = array<i64: 1, 1, 64>}]} {
    %c0 = arith.constant 0 : index
    %c0_0 = arith.constant 0 : index
    %c0_1 = arith.constant 0 : index
    %0 = vector.load %arg1[%c0, %c0_0, %c0_1] : memref<1x64x256xf32, #tpu.memory_space<vmem>>, vector<1x64x256xf32>
    %cst = arith.constant dense<0.000000e+00> : vector<1x64xf32>
    %1 = vector.multi_reduction <add>, %0, %cst [2] : vector<1x64x256xf32> to vector<1x64xf32>
    %cst_2 = arith.constant 2.560000e+02 : f32
    %2 = vector.broadcast %cst_2 : f32 to vector<1x64xf32>
    %3 = arith.divf %1, %2 : vector<1x64xf32>
    %c0_3 = arith.constant 0 : index
    %c0_4 = arith.constant 0 : index
    %4 = vector.load %arg2[%c0_3, %c0_4] : memref<64x4xf32, #tpu.memory_space<vmem>>, vector<64x4xf32>
    %cst_5 = arith.constant dense<0.000000e+00> : vector<1x4xf32>
    %5 = tpu.matmul %3, %4, %cst_5 {dimension_numbers = #tpu.dot_dimension_numbers<[1], [0], [0], [1], [0, 0, 1, 1], [], []>} : vector<1x64xf32>, vector<64x4xf32>, vector<1x4xf32> -> vector<1x4xf32>
    %cst_6 = arith.constant 0.000000e+00 : f32
    %6 = vector.broadcast %cst_6 : f32 to vector<1x4xf32>
    %7 = arith.maximumf %5, %6 : vector<1x4xf32>
    %c0_7 = arith.constant 0 : index
    %c0_8 = arith.constant 0 : index
    %8 = vector.load %arg3[%c0_7, %c0_8] : memref<4x64xf32, #tpu.memory_space<vmem>>, vector<4x64xf32>
    %cst_9 = arith.constant dense<0.000000e+00> : vector<1x64xf32>
    %9 = tpu.matmul %7, %8, %cst_9 {dimension_numbers = #tpu.dot_dimension_numbers<[1], [0], [0], [1], [0, 0, 1, 1], [], []>} : vector<1x4xf32>, vector<4x64xf32>, vector<1x64xf32> -> vector<1x64xf32>
    %10 = arith.negf %9 : vector<1x64xf32>
    %11 = math.exp %10 : vector<1x64xf32>
    %cst_10 = arith.constant 1.000000e+00 : f32
    %12 = vector.broadcast %cst_10 : f32 to vector<1x64xf32>
    %13 = arith.addf %12, %11 : vector<1x64xf32>
    %14 = arith.divf %12, %13 : vector<1x64xf32>
    %15 = vector.shape_cast %14 : vector<1x64xf32> to vector<1x64x1xf32>
    %c0_11 = arith.constant 0 : index
    %c0_12 = arith.constant 0 : index
    %c0_13 = arith.constant 0 : index
    %16 = vector.load %arg1[%c0_11, %c0_12, %c0_13] : memref<1x64x256xf32, #tpu.memory_space<vmem>>, vector<1x64x256xf32>
    %17 = vector.broadcast %15 : vector<1x64x1xf32> to vector<1x64x256xf32>
    %18 = arith.mulf %16, %17 : vector<1x64x256xf32>
    %c0_14 = arith.constant 0 : index
    %c0_15 = arith.constant 0 : index
    %c0_16 = arith.constant 0 : index
    %19 = vector.load %arg4[%c0_14, %c0_15, %c0_16] : memref<1x64x256xf32, #tpu.memory_space<vmem>>, vector<1x64x256xf32>
    tpu.vector_store %arg4[%c0_14, %c0_15, %c0_16], %18 {strides = array<i32>} : memref<1x64x256xf32, #tpu.memory_space<vmem>>, vector<1x64x256xf32>,
    %20 = vector.shape_cast %14 : vector<1x64xf32> to vector<1x1x64xf32>
    %c0_17 = arith.constant 0 : index
    %c0_18 = arith.constant 0 : index
    %c0_19 = arith.constant 0 : index
    %21 = vector.load %arg5[%c0_17, %c0_18, %c0_19] : memref<1x1x64xf32, #tpu.memory_space<vmem>>, vector<1x1x64xf32>
    tpu.vector_store %arg5[%c0_17, %c0_18, %c0_19], %20 {strides = array<i32>} : memref<1x1x64xf32, #tpu.memory_space<vmem>>, vector<1x1x64xf32>,
    return
  }
  func.func @transform_0(%arg0: i32) -> (i32, i32, i32) {
    %c0_i32 = arith.constant 0 : i32
    %c0_i32_0 = arith.constant 0 : i32
    %c0_i32_1 = arith.constant 0 : i32
    return %arg0, %c0_i32, %c0_i32_0 : i32, i32, i32
  }
  func.func @transform_1(%arg0: i32) -> (i32, i32) {
    %c0_i32 = arith.constant 0 : i32
    %c0_i32_0 = arith.constant 0 : i32
    %c0_i32_1 = arith.constant 0 : i32
    return %c0_i32, %c0_i32_0 : i32, i32
  }
  func.func @transform_2(%arg0: i32) -> (i32, i32) {
    %c0_i32 = arith.constant 0 : i32
    %c0_i32_0 = arith.constant 0 : i32
    %c0_i32_1 = arith.constant 0 : i32
    return %c0_i32, %c0_i32_0 : i32, i32
  }
  func.func @transform_3(%arg0: i32) -> (i32, i32, i32) {
    %c0_i32 = arith.constant 0 : i32
    %c0_i32_0 = arith.constant 0 : i32
    %c0_i32_1 = arith.constant 0 : i32
    return %arg0, %c0_i32, %c0_i32_0 : i32, i32, i32
  }
  func.func @transform_4(%arg0: i32) -> (i32, i32, i32) {
    %c0_i32 = arith.constant 0 : i32
    %c0_i32_0 = arith.constant 0 : i32
    %c0_i32_1 = arith.constant 0 : i32
    return %arg0, %c0_i32, %c0_i32_0 : i32, i32, i32
  }
}

</mosaic_0001>

<llo_original>
// kernel: tpu_custom_call.1
$region0: #{tpu_custom_call.1}
  #allocation0 [shape = 'u32[]', space=smem, size = 0x4, offset = 0x4, fixed_abs, tag = 'smem constant byte address 0x4 - core index']
  #allocation1 [shape = 'u32[144,128]{1,0:T(1,128)}', space=vmem, size = 0x12000, scoped, tag = 'internal scratch']
  %s0 = inlined_call_operand.hbm [shape: f32[2,64,256], index: 0, kind: input, shape index: {}]
  %s1 = inlined_call_operand.vmem [shape: f32[64,4], index: 1, kind: input, shape index: {}]
  %s2 = inlined_call_operand.vmem [shape: f32[4,64], index: 2, kind: input, shape index: {}]
  %s3 = inlined_call_operand.hbm [shape: f32[2,64,256], index: 3, kind: output, shape index: {0}]
  %s4 = inlined_call_operand.hbm [shape: f32[2,1,64], index: 4, kind: output, shape index: {1}]
  %5 = xla_tuple %s3, %s4
  %s6 = sld [smem:[#allocation0]]
  $region57: #{tpu_custom_call.1} parent=0
    _
  %s8 = ssub.s32 1, %s6
  %s9 = scalar_select 0, %s8, %s6
  $region1: #{tpu_custom_call.1} parent=0
    #allocation2 [shape = 'u8[131072]{0}', space=vmem, size = 0x20000, scoped, tag = 'input window, operand 0']
    #allocation3 [shape = 's32[2]{0}', space=sflag, size = 0x8, scoped, tag = 'scoped memory for tpu_custom_call.1']
    #allocation4 [shape = 's32[2]{0}', space=sflag, size = 0x8, scoped, tag = 'scoped memory for tpu_custom_call.1']
    #allocation5 [shape = 'u8[131072]{0}', space=vmem, size = 0x20000, scoped, tag = 'output window, operand 0']
    #allocation6 [shape = 'u8[1024]{0}', space=vmem, size = 0x400, scoped, tag = 'output window, operand 1']
    #allocation7 [shape = 's32[2]{0}', space=sflag, size = 0x8, scoped, tag = 'scoped memory for tpu_custom_call.1']
    %10 = vsyncpa [#allocation3], 0
    %s11 = scalar_lea.sflag [#allocation3], 1
    %12 = vsyncpa %s11, 0
    %13 = vsyncpa [#allocation4], 0
    %s14 = scalar_lea.sflag [#allocation4], 1
    %15 = vsyncpa %s14, 0
    %16 = vsyncpa [#allocation7], 0
    %s17 = scalar_lea.sflag [#allocation7], 1
    %18 = vsyncpa %s17, 0
    loop: start=0, step=1, limit=4
    $region2: #{tpu_custom_call.1} parent=1 // loop_pre_header
      _
    $region3: #{tpu_custom_call.1} parent=1 // loop_header
      %s20 = sphi 0, %s24
      %p21 = scmp.ge.s32.totalorder %s20, 4
      %s30 = sphi 0, %s32
      %s33 = sphi 0, %s30
      %s34 = sphi 0, %s33
      %s50 = sphi 0, %s34
      %s54 = sphi 0, %s54
      %s56 = sphi 0, %s54
      %s57 = sphi 0, %s56
      %s71 = sphi 0, %s57
      %s75 = sphi 0, %s75
      %s77 = sphi 0, %s75
      %s78 = sphi 0, %s77
      %s92 = sphi 0, %s78
      %s98 = sphi 0, %s100
      %s101 = sphi 0, %s98
      %s102 = sphi 0, %s101
      %s118 = sphi 0, %s102
      %s124 = sphi 0, %s126
      %s127 = sphi 0, %s124
      %s128 = sphi 0, %s127
      %s144 = sphi 0, %s128
    $region4: #{tpu_custom_call.1} parent=1 // loop_header_branch
      %23 = sbr.rel (%p21) target = $region8
    $region5: #{tpu_custom_call.1} parent=1 // loop_body
      %s25 = ssub.s32 %s20, 1
      %s26 = ssub.s32 %s20, 2
      %s27 = sadd.s32 %s20, 1
      %s28 = ssub.s32 %s20, %s27
      %p29 = scmp.eq.s32.totalorder %s28, 0
      %s31 = sadd.s32 %s30, 1
      %s32 = scalar_select %p29, %s30, %s31
      %p35 = pneg %p29
      %p36 = scmp.eq.s32.totalorder %s20, 1
      %p37 = por %p35, %p36
      %p38 = scmp.ne.s32.totalorder %s30, %s33
      %p39 = scmp.eq.s32.totalorder %s20, 0
      %p40 = por %p38, %p39
      %p41 = scmp.ne.s32.totalorder %s30, %s33
      %p42 = scmp.eq.s32.totalorder %s25, 1
      %p43 = por %p41, %p42
      %p44 = scmp.ne.s32.totalorder %s33, %s34
      %p45 = scmp.eq.s32.totalorder %s25, 0
      %p46 = por %p44, %p45
      %p47 = scmp.ne.s32.totalorder %s33, %s34
      %p48 = scmp.eq.s32.totalorder %s26, 1
      %p49 = por %p47, %p48
      %p51 = scmp.ne.s32.totalorder %s34, %s50
      %p52 = scmp.eq.s32.totalorder %s26, 0
      %p53 = por %p51, %p52
      %s55 = sadd.s32 %s54, 1
      %p58 = scmp.eq.s32.totalorder %s20, 1
      %p59 = scmp.ne.s32.totalorder %s54, %s56
      %p60 = scmp.eq.s32.totalorder %s20, 0
      %p61 = por %p59, %p60
      %p62 = scmp.ne.s32.totalorder %s54, %s56
      %p63 = scmp.eq.s32.totalorder %s25, 1
      %p64 = por %p62, %p63
      %p65 = scmp.ne.s32.totalorder %s56, %s57
      %p66 = scmp.eq.s32.totalorder %s25, 0
      %p67 = por %p65, %p66
      %p68 = scmp.ne.s32.totalorder %s56, %s57
      %p69 = scmp.eq.s32.totalorder %s26, 1
      %p70 = por %p68, %p69
      %p72 = scmp.ne.s32.totalorder %s57, %s71
      %p73 = scmp.eq.s32.totalorder %s26, 0
      %p74 = por %p72, %p73
      %s76 = sadd.s32 %s75, 1
      %p79 = scmp.eq.s32.totalorder %s20, 1
      %p80 = scmp.ne.s32.totalorder %s75, %s77
      %p81 = scmp.eq.s32.totalorder %s20, 0
      %p82 = por %p80, %p81
      %p83 = scmp.ne.s32.totalorder %s75, %s77
      %p84 = scmp.eq.s32.totalorder %s25, 1
      %p85 = por %p83, %p84
      %p86 = scmp.ne.s32.totalorder %s77, %s78
      %p87 = scmp.eq.s32.totalorder %s25, 0
      %p88 = por %p86, %p87
      %p89 = scmp.ne.s32.totalorder %s77, %s78
      %p90 = scmp.eq.s32.totalorder %s26, 1
      %p91 = por %p89, %p90
      %p93 = scmp.ne.s32.totalorder %s78, %s92
      %p94 = scmp.eq.s32.totalorder %s26, 0
      %p95 = por %p93, %p94
      %s96 = ssub.s32 %s20, %s27
      %p97 = scmp.eq.s32.totalorder %s96, 0
      %s99 = sadd.s32 %s98, 1
      %s100 = scalar_select %p97, %s98, %s99
      %p103 = pneg %p97
      %p104 = scmp.eq.s32.totalorder %s20, 1
      %p105 = por %p103, %p104
      %p106 = scmp.ne.s32.totalorder %s98, %s101
      %p107 = scmp.eq.s32.totalorder %s20, 0
      %p108 = por %p106, %p107
      %p109 = scmp.ne.s32.totalorder %s98, %s101
      %p110 = scmp.eq.s32.totalorder %s25, 1
      %p111 = por %p109, %p110
      %p112 = scmp.ne.s32.totalorder %s101, %s102
      %p113 = scmp.eq.s32.totalorder %s25, 0
      %p114 = por %p112, %p113
      %p115 = scmp.ne.s32.totalorder %s101, %s102
      %p116 = scmp.eq.s32.totalorder %s26, 1
      %p117 = por %p115, %p116
      %p119 = scmp.ne.s32.totalorder %s102, %s118
      %p120 = scmp.eq.s32.totalorder %s26, 0
      %p121 = por %p119, %p120
      %s122 = ssub.s32 %s20, %s27
      %p123 = scmp.eq.s32.totalorder %s122, 0
      %s125 = sadd.s32 %s124, 1
      %s126 = scalar_select %p123, %s124, %s125
      %p129 = pneg %p123
      %p130 = scmp.eq.s32.totalorder %s20, 1
      %p131 = por %p129, %p130
      %p132 = scmp.ne.s32.totalorder %s124, %s127
      %p133 = scmp.eq.s32.totalorder %s20, 0
      %p134 = por %p132, %p133
      %p135 = scmp.ne.s32.totalorder %s124, %s127
      %p136 = scmp.eq.s32.totalorder %s25, 1
      %p137 = por %p135, %p136
      %p138 = scmp.ne.s32.totalorder %s127, %s128
      %p139 = scmp.eq.s32.totalorder %s25, 0
      %p140 = por %p138, %p139
      %p141 = scmp.ne.s32.totalorder %s127, %s128
      %p142 = scmp.eq.s32.totalorder %s26, 1
      %p143 = por %p141, %p142
      %p145 = scmp.ne.s32.totalorder %s128, %s144
      %p146 = scmp.eq.s32.totalorder %s26, 0
      %p147 = por %p145, %p146
      %p148 = scmp.le.s32.totalorder 1, %s20
      %p149 = scmp.lt.s32.totalorder %s20, 3
      %p150 = pnand %p148, %p149
      %p151 = pneg %p150
      // Predicated region
      $region9: #{tpu_custom_call.1} parent=5 // pred_check
        _
      $region10: #{tpu_custom_call.1} parent=5 // pred_check_branch
        %153 = sbr.rel (%p150) target = $region12
      $region11: #{tpu_custom_call.1} parent=5 // pred_region
        %s154 = ssub.s32 %s20, 1
        // Predicated region
        $region13: #{tpu_custom_call.1} parent=11 // pred_check
          %p155 = pneg %p67
        $region14: #{tpu_custom_call.1} parent=11 // pred_check_branch
          %157 = sbr.rel (%p155) target = $region16
        $region15: #{tpu_custom_call.1} parent=11 // pred_region
          _
        $region16: #{tpu_custom_call.1} parent=11 // pred_fallthru
          _
        // Predicated region
        $region17: #{tpu_custom_call.1} parent=11 // pred_check
          %p158 = pneg %p88
        $region18: #{tpu_custom_call.1} parent=11 // pred_check_branch
          %160 = sbr.rel (%p158) target = $region20
        $region19: #{tpu_custom_call.1} parent=11 // pred_region
          _
        $region20: #{tpu_custom_call.1} parent=11 // pred_fallthru
          _
      $region12: #{tpu_custom_call.1} parent=5 // pred_fallthru
        _
      %p161 = scmp.lt.s32.totalorder %s20, 2
      // Predicated region
      $region21: #{tpu_custom_call.1} parent=5 // pred_check
        %p162 = pneg %p161
      $region22: #{tpu_custom_call.1} parent=5 // pred_check_branch
        %164 = sbr.rel (%p162) target = $region24
      $region23: #{tpu_custom_call.1} parent=5 // pred_region
        // Predicated region
        $region25: #{tpu_custom_call.1} parent=23 // pred_check
          %p165 = pneg %p40
        $region26: #{tpu_custom_call.1} parent=23 // pred_check_branch
          %167 = sbr.rel (%p165) target = $region28
        $region27: #{tpu_custom_call.1} parent=23 // pred_region
          %s168 = sand.u32 %s30, 1
          %s169 = scalar_lea.sflag [#allocation3], %s168
          %s170 = sand.u32 %s30, 1
          %s171 = smul.addr %s170, 128
          %s172 = scalar_lea.vmem [#allocation2], %s171
          %s174 = ssub.s32 2048, 2048
          %175 = vsyncadd %s169, %s174
          %s176 = smul.addr %s20, 16
          %s177 = smul.addr %s176, 128
          %s178 = scalar_lea.hbm %s0, %s177
          %s179 = sshll.u32 %s172, 4
          %s180 = int_to_ptr.vmem [resolvable:$true] %s179
          %185 = dma.hbm_to_vmem [thread:$0]  %s178, 2048, %s180, %s169, 256, 256, 16
        $region28: #{tpu_custom_call.1} parent=23 // pred_fallthru
          _
      $region24: #{tpu_custom_call.1} parent=5 // pred_fallthru
        _
      %p186 = scmp.le.s32.totalorder 1, %s20
      %p187 = scmp.lt.s32.totalorder %s20, 3
      %p188 = pnand %p186, %p187
      %p189 = pneg %p188
      // Predicated region
      $region29: #{tpu_custom_call.1} parent=5 // pred_check
        _
      $region30: #{tpu_custom_call.1} parent=5 // pred_check_branch
        %191 = sbr.rel (%p188) target = $region32
      $region31: #{tpu_custom_call.1} parent=5 // pred_region
        %s192 = ssub.s32 %s20, 1
        %s193 = sand.u32 %s33, 1
        %s194 = scalar_lea.sflag [#allocation3], %s193
        %s195 = sand.u32 %s33, 1
        %s196 = smul.addr %s195, 128
        %s197 = scalar_lea.vmem [#allocation2], %s196
        // Predicated region
        $region33: #{tpu_custom_call.1} parent=31 // pred_check
          %p198 = pneg %p46
        $region34: #{tpu_custom_call.1} parent=31 // pred_check_branch
          %200 = sbr.rel (%p198) target = $region36
        $region35: #{tpu_custom_call.1} parent=31 // pred_region
          %201 = dma.done %s194, 2048
        $region36: #{tpu_custom_call.1} parent=31 // pred_fallthru
          _
        %s202 = sand.u32 %s33, 1
        %s203 = scalar_lea.sflag [#allocation3], %s202
        %s204 = sand.u32 %s33, 1
        %s205 = smul.addr %s204, 128
        %s206 = scalar_lea.vmem [#allocation2], %s205
        %p207 = pneg %p46
        %p208 = pneg %p43
        %p209 = pneg %p67
        %p210 = pneg %p64
        %p211 = pneg %p88
        %p212 = pneg %p85
        %p213 = pneg %p114
        %p214 = pneg %p111
        %s215 = sand.u32 %s101, 1
        %s216 = scalar_lea.sflag [#allocation4], %s215
        %s217 = sand.u32 %s101, 1
        %s218 = smul.addr %s217, 128
        %s219 = scalar_lea.vmem [#allocation5], %s218
        %p220 = pneg %p140
        %p221 = pneg %p137
        %s222 = sand.u32 %s127, 1
        %s223 = scalar_lea.sflag [#allocation7], %s222
        %s224 = sand.u32 %s127, 1
        %s225 = scalar_lea.vmem [#allocation6], %s224
        %v226 = vld [vmem:[%s197] sm:$0xff]
        %v227 = vld [vmem:[%s197 + $0x8] sm:$0xff]
        %v228 = vld [vmem:[%s197 + $0x10] sm:$0xff]
        %v229 = vld [vmem:[%s197 + $0x18] sm:$0xff]
        %v230 = vld [vmem:[%s197 + $0x20] sm:$0xff]
        %v231 = vld [vmem:[%s197 + $0x28] sm:$0xff]
        %v232 = vld [vmem:[%s197 + $0x30] sm:$0xff]
        %v233 = vld [vmem:[%s197 + $0x38] sm:$0xff]
        %v234 = vld [vmem:[%s197 + $0x40] sm:$0xff]
        %v235 = vld [vmem:[%s197 + $0x48] sm:$0xff]
        %v236 = vld [vmem:[%s197 + $0x50] sm:$0xff]
        %v237 = vld [vmem:[%s197 + $0x58] sm:$0xff]
        %v238 = vld [vmem:[%s197 + $0x60] sm:$0xff]
        %v239 = vld [vmem:[%s197 + $0x68] sm:$0xff]
        %v240 = vld [vmem:[%s197 + $0x70] sm:$0xff]
        %v241 = vld [vmem:[%s197 + $0x78] sm:$0xff]
        %v242 = vadd.f32 %v226, %v227
        %243 = vadd.xlane.f32.xlu0 %v242
        %v244 = vpop.xlane.xlu0 %243
        %v245 = vadd.f32 %v228, %v229
        %246 = vadd.xlane.f32.xlu0 %v245
        %v247 = vpop.xlane.xlu0 %246
        %v248 = vadd.f32 %v230, %v231
        %249 = vadd.xlane.f32.xlu0 %v248
        %v250 = vpop.xlane.xlu0 %249
        %v251 = vadd.f32 %v232, %v233
        %252 = vadd.xlane.f32.xlu0 %v251
        %v253 = vpop.xlane.xlu0 %252
        %v254 = vadd.f32 %v234, %v235
        %255 = vadd.xlane.f32.xlu0 %v254
        %v256 = vpop.xlane.xlu0 %255
        %v257 = vadd.f32 %v236, %v237
        %258 = vadd.xlane.f32.xlu0 %v257
        %v259 = vpop.xlane.xlu0 %258
        %v260 = vadd.f32 %v238, %v239
        %261 = vadd.xlane.f32.xlu0 %v260
        %v262 = vpop.xlane.xlu0 %261
        %v263 = vadd.f32 %v240, %v241
        %264 = vadd.xlane.f32.xlu0 %v263
        %v265 = vpop.xlane.xlu0 %264
        %v266 = vrcp.pop 256.0
        %v267 = vmul.f32 %v244, %v266
        %v268 = vmul.f32 %v247, %v266
        %v269 = vmul.f32 %v250, %v266
        %v270 = vmul.f32 %v253, %v266
        %v271 = vmul.f32 %v256, %v266
        %v272 = vmul.f32 %v259, %v266
        %v273 = vmul.f32 %v262, %v266
        %v274 = vmul.f32 %v265, %v266
        %v275 = vld [vmem:[%s1] sm:$0xff]
        %v276 = vld [vmem:[%s1 + $0x8] sm:$0xff]
        %v277 = vld [vmem:[%s1 + $0x10] sm:$0xff]
        %v278 = vld [vmem:[%s1 + $0x18] sm:$0xff]
        %v279 = vld [vmem:[%s1 + $0x20] sm:$0xff]
        %v280 = vld [vmem:[%s1 + $0x28] sm:$0xff]
        %v281 = vld [vmem:[%s1 + $0x30] sm:$0xff]
        %v282 = vld [vmem:[%s1 + $0x38] sm:$0xff]
        %v291 = vlaneseq
        %v292 = vand.u32 %v291, 127
        %v293 = vlaneseq
        %v294 = vshrl.u32 %v293, 7
        %v295 = vsub.s32 %v292, %v294
        %v296 = vrot.slane %v267, %v295
        %v297 = vadd.s32 %v292, 4294967288
        %v298 = vlaneseq
        %v299 = vshrl.u32 %v298, 7
        %v300 = vsub.s32 %v297, %v299
        %v301 = vrot.slane %v268, %v300
        %vm302 = vcmask 130112
        %v303 = vsel %vm302, %v301, %v296
        %v304 = vadd.s32 %v292, 4294967280
        %v305 = vlaneseq
        %v306 = vshrl.u32 %v305, 7
        %v307 = vsub.s32 %v304, %v306
        %v308 = vrot.slane %v269, %v307
        %vm309 = vcmask 195712
        %v310 = vsel %vm309, %v308, %v303
        %v311 = vadd.s32 %v292, 4294967272
        %v312 = vlaneseq
        %v313 = vshrl.u32 %v312, 7
        %v314 = vsub.s32 %v311, %v313
        %v315 = vrot.slane %v270, %v314
        %vm316 = vcmask 261312
        %v317 = vsel %vm316, %v315, %v310
        %v318 = vadd.s32 %v292, 4294967264
        %v319 = vlaneseq
        %v320 = vshrl.u32 %v319, 7
        %v321 = vsub.s32 %v318, %v320
        %v322 = vrot.slane %v271, %v321
        %vm323 = vcmask 326912
        %v324 = vsel %vm323, %v322, %v317
        %v325 = vadd.s32 %v292, 4294967256
        %v326 = vlaneseq
        %v327 = vshrl.u32 %v326, 7
        %v328 = vsub.s32 %v325, %v327
        %v329 = vrot.slane %v272, %v328
        %vm330 = vcmask 392512
        %v331 = vsel %vm330, %v329, %v324
        %v332 = vadd.s32 %v292, 4294967248
        %v333 = vlaneseq
        %v334 = vshrl.u32 %v333, 7
        %v335 = vsub.s32 %v332, %v334
        %v336 = vrot.slane %v273, %v335
        %vm337 = vcmask 458112
        %v338 = vsel %vm337, %v336, %v331
        %v339 = vadd.s32 %v292, 4294967240
        %v340 = vlaneseq
        %v341 = vshrl.u32 %v340, 7
        %v342 = vsub.s32 %v339, %v341
        %v343 = vrot.slane %v274, %v342
        %vm344 = vcmask 523712
        %v345 = vsel %vm344, %v343, %v338
        %vm346 = vcmask 523264
        %v347 = vsel %vm346, %v345, 0
        %349 = vmatprep.subr.mxu0 0.0
        %350 = vmatpush1.msra.mxu0 %v275
        %351 = vmatprep.subr.mxu0 0.0
        %352 = vmatpush1.msra.mxu0 %v276
        %353 = vmatprep.subr.mxu0 0.0
        %354 = vmatpush1.msra.mxu0 %v277
        %355 = vmatprep.subr.mxu0 0.0
        %356 = vmatpush1.msra.mxu0 %v278
        %357 = vmatprep.subr.mxu0 0.0
        %358 = vmatpush1.msra.mxu0 %v279
        %359 = vmatprep.subr.mxu0 0.0
        %360 = vmatpush1.msra.mxu0 %v280
        %361 = vmatprep.subr.mxu0 0.0
        %362 = vmatpush1.msra.mxu0 %v281
        %363 = vmatprep.subr.mxu0 0.0
        %364 = vmatpush1.msra.mxu0 %v282
        %365 = vmatprep.subr.mxu0 0.0
        %366 = vmatpush1.msra.mxu0 0.0
        %367 = vmatprep.subr.mxu0 0.0
        %368 = vmatpush1.msra.mxu0 0.0
        %369 = vmatprep.subr.mxu0 0.0
        %370 = vmatpush1.msra.mxu0 0.0
        %371 = vmatprep.subr.mxu0 0.0
        %372 = vmatpush1.msra.mxu0 0.0
        %373 = vmatprep.subr.mxu0 0.0
        %374 = vmatpush1.msra.mxu0 0.0
        %375 = vmatprep.subr.mxu0 0.0
        %376 = vmatpush1.msra.mxu0 0.0
        %377 = vmatprep.subr.mxu0 0.0
        %378 = vmatpush1.msra.mxu0 0.0
        %379 = vmatprep.subr.mxu0 0.0
        %380 = vmatpush1.msra.mxu0 0.0
        %381 = vmatprep.subr.mxu0 0.0
        %382 = vmatpush1.msra.mxu0 0.0
        %383 = vmatprep.subr.mxu0 0.0
        %384 = vmatpush1.msra.mxu0 0.0
        %385 = vmatprep.subr.mxu0 0.0
        %386 = vmatpush1.msra.mxu0 0.0
        %387 = vmatprep.subr.mxu0 0.0
        %388 = vmatpush1.msra.mxu0 0.0
        %389 = vmatprep.subr.mxu0 0.0
        %390 = vmatpush1.msra.mxu0 0.0
        %391 = vmatprep.subr.mxu0 0.0
        %392 = vmatpush1.msra.mxu0 0.0
        %393 = vmatprep.subr.mxu0 0.0
        %394 = vmatpush1.msra.mxu0 0.0
        %395 = vmatprep.subr.mxu0 0.0
        %396 = vmatpush1.msra.mxu0 0.0
        %397 = vmatprep.subr.mxu0 0.0
        %398 = vmatpush1.msra.mxu0 0.0
        %399 = vmatprep.subr.mxu0 0.0
        %400 = vmatpush1.msra.mxu0 0.0
        %401 = vmatprep.subr.mxu0 0.0
        %402 = vmatpush1.msra.mxu0 0.0
        %403 = vmatprep.subr.mxu0 0.0
        %404 = vmatpush1.msra.mxu0 0.0
        %405 = vmatprep.subr.mxu0 0.0
        %406 = vmatpush1.msra.mxu0 0.0
        %407 = vmatprep.subr.mxu0 0.0
        %408 = vmatpush1.msra.mxu0 0.0
        %409 = vmatprep.subr.mxu0 0.0
        %410 = vmatpush1.msra.mxu0 0.0
        %411 = vmatprep.subr.mxu0 0.0
        %412 = vmatpush1.msra.mxu0 0.0
        %413 = vmatprep.mubr.f32.mxu0 0.0
        %414 = vmatmul.mubr.f32.gmra.mrb[0].mxu0 %v347
        %v415 = vpop.f32.mrb[0].mxu0
        %v416 = vadd.f32 0.0, %v415
        %v417 = vpop.f32.mrb[0].mxu0
        %418 = vdwg.mxu0
        %v419 = vmax.f32 %v416, 0.0
        %v420 = vld [vmem:[%s2] sm:$0xf]
        %vm421 = vcmask 31744
        %v423 = vsel %vm421, %v419, 0
        %vm425 = vcmask 1043456
        %v427 = vsel %vm425, %v420, 0
        %429 = vmatprep.subr.mxu0 0.0
        %430 = vmatpush1.msra.mxu0 %v427
        %431 = vmatprep.subr.mxu0 0.0
        %432 = vmatpush1.msra.mxu0 0.0
        %433 = vmatprep.subr.mxu0 0.0
        %434 = vmatpush1.msra.mxu0 0.0
        %435 = vmatprep.subr.mxu0 0.0
        %436 = vmatpush1.msra.mxu0 0.0
        %437 = vmatprep.subr.mxu0 0.0
        %438 = vmatpush1.msra.mxu0 0.0
        %439 = vmatprep.subr.mxu0 0.0
        %440 = vmatpush1.msra.mxu0 0.0
        %441 = vmatprep.subr.mxu0 0.0
        %442 = vmatpush1.msra.mxu0 0.0
        %443 = vmatprep.subr.mxu0 0.0
        %444 = vmatpush1.msra.mxu0 0.0
        %445 = vmatprep.subr.mxu0 0.0
        %446 = vmatpush1.msra.mxu0 0.0
        %447 = vmatprep.subr.mxu0 0.0
        %448 = vmatpush1.msra.mxu0 0.0
        %449 = vmatprep.subr.mxu0 0.0
        %450 = vmatpush1.msra.mxu0 0.0
        %451 = vmatprep.subr.mxu0 0.0
        %452 = vmatpush1.msra.mxu0 0.0
        %453 = vmatprep.subr.mxu0 0.0
        %454 = vmatpush1.msra.mxu0 0.0
        %455 = vmatprep.subr.mxu0 0.0
        %456 = vmatpush1.msra.mxu0 0.0
        %457 = vmatprep.subr.mxu0 0.0
        %458 = vmatpush1.msra.mxu0 0.0
        %459 = vmatprep.subr.mxu0 0.0
        %460 = vmatpush1.msra.mxu0 0.0
        %461 = vmatprep.subr.mxu0 0.0
        %462 = vmatpush1.msra.mxu0 0.0
        %463 = vmatprep.subr.mxu0 0.0
        %464 = vmatpush1.msra.mxu0 0.0
        %465 = vmatprep.subr.mxu0 0.0
        %466 = vmatpush1.msra.mxu0 0.0
        %467 = vmatprep.subr.mxu0 0.0
        %468 = vmatpush1.msra.mxu0 0.0
        %469 = vmatprep.subr.mxu0 0.0
        %470 = vmatpush1.msra.mxu0 0.0
        %471 = vmatprep.subr.mxu0 0.0
        %472 = vmatpush1.msra.mxu0 0.0
        %473 = vmatprep.subr.mxu0 0.0
        %474 = vmatpush1.msra.mxu0 0.0
        %475 = vmatprep.subr.mxu0 0.0
        %476 = vmatpush1.msra.mxu0 0.0
        %477 = vmatprep.subr.mxu0 0.0
        %478 = vmatpush1.msra.mxu0 0.0
        %479 = vmatprep.subr.mxu0 0.0
        %480 = vmatpush1.msra.mxu0 0.0
        %481 = vmatprep.subr.mxu0 0.0
        %482 = vmatpush1.msra.mxu0 0.0
        %483 = vmatprep.subr.mxu0 0.0
        %484 = vmatpush1.msra.mxu0 0.0
        %485 = vmatprep.subr.mxu0 0.0
        %486 = vmatpush1.msra.mxu0 0.0
        %487 = vmatprep.subr.mxu0 0.0
        %488 = vmatpush1.msra.mxu0 0.0
        %489 = vmatprep.subr.mxu0 0.0
        %490 = vmatpush1.msra.mxu0 0.0
        %491 = vmatprep.subr.mxu0 0.0
        %492 = vmatpush1.msra.mxu0 0.0
        %493 = vmatprep.mubr.f32.mxu0 0.0
        %494 = vmatmul.mubr.f32.gmra.mrb[0].mxu0 %v423
        %v495 = vpop.f32.mrb[0].mxu0
        %v496 = vadd.f32 0.0, %v495
        %v497 = vpop.f32.mrb[0].mxu0
        %498 = vdwg.mxu0
        %v499 = vxor.u32 %v496, 2147483648
        %v500 = vmul.f32 %v499, 1.442695
        %v501 = vpow.pop %v500
        %v502 = vadd.f32 %v501, 1.0
        %v503 = vrcp.pop %v502
        %v504 = vmul.f32 1.0, %v503
        %v505 = vlaneseq
        %v506 = vshrl.u32 %v505, 7
        %v507 = vsub.s32 0, %v506
        %v508 = vrot.slane %v504, %v507
        %510 = vbcast.lane.b32.xlu0 %v508, 256
        %v511 = vpop.permute.xlu0 %510
        %s513 = sor.u32 256, 8
        %514 = vbcast.lane.b32.xlu0 %v508, %s513
        %v515 = vpop.permute.xlu0 %514
        %s517 = sor.u32 256, 16
        %518 = vbcast.lane.b32.xlu0 %v508, %s517
        %v519 = vpop.permute.xlu0 %518
        %s521 = sor.u32 256, 24
        %522 = vbcast.lane.b32.xlu0 %v508, %s521
        %v523 = vpop.permute.xlu0 %522
        %s525 = sor.u32 256, 32
        %526 = vbcast.lane.b32.xlu0 %v508, %s525
        %v527 = vpop.permute.xlu0 %526
        %s529 = sor.u32 256, 40
        %530 = vbcast.lane.b32.xlu0 %v508, %s529
        %v531 = vpop.permute.xlu0 %530
        %s533 = sor.u32 256, 48
        %534 = vbcast.lane.b32.xlu0 %v508, %s533
        %v535 = vpop.permute.xlu0 %534
        %s537 = sor.u32 256, 56
        %538 = vbcast.lane.b32.xlu0 %v508, %s537
        %v539 = vpop.permute.xlu0 %538
        %v540 = vmul.f32 %v226, %v511
        %v541 = vmul.f32 %v227, %v511
        %v542 = vmul.f32 %v228, %v515
        %v543 = vmul.f32 %v229, %v515
        %v544 = vmul.f32 %v230, %v519
        %v545 = vmul.f32 %v231, %v519
        %v546 = vmul.f32 %v232, %v523
        %v547 = vmul.f32 %v233, %v523
        %v548 = vmul.f32 %v234, %v527
        %v549 = vmul.f32 %v235, %v527
        %v550 = vmul.f32 %v236, %v531
        %v551 = vmul.f32 %v237, %v531
        %v552 = vmul.f32 %v238, %v535
        %v553 = vmul.f32 %v239, %v535
        %v554 = vmul.f32 %v240, %v539
        %v555 = vmul.f32 %v241, %v539
        %556 = vst [vmem:[%s219] sm:$0xff] %v540
        %557 = vst [vmem:[%s219 + $0x8] sm:$0xff] %v541
        %558 = vst [vmem:[%s219 + $0x10] sm:$0xff] %v542
        %559 = vst [vmem:[%s219 + $0x18] sm:$0xff] %v543
        %560 = vst [vmem:[%s219 + $0x20] sm:$0xff] %v544
        %561 = vst [vmem:[%s219 + $0x28] sm:$0xff] %v545
        %562 = vst [vmem:[%s219 + $0x30] sm:$0xff] %v546
        %563 = vst [vmem:[%s219 + $0x38] sm:$0xff] %v547
        %564 = vst [vmem:[%s219 + $0x40] sm:$0xff] %v548
        %565 = vst [vmem:[%s219 + $0x48] sm:$0xff] %v549
        %566 = vst [vmem:[%s219 + $0x50] sm:$0xff] %v550
        %567 = vst [vmem:[%s219 + $0x58] sm:$0xff] %v551
        %568 = vst [vmem:[%s219 + $0x60] sm:$0xff] %v552
        %569 = vst [vmem:[%s219 + $0x68] sm:$0xff] %v553
        %570 = vst [vmem:[%s219 + $0x70] sm:$0xff] %v554
        %571 = vst [vmem:[%s219 + $0x78] sm:$0xff] %v555
        %vm572 = vcmask 516096
        %573 = vst.msk [vmem:[%s225] sm:$0x1] %vm572, %v504
        %s574 = sand.u32 %s101, 1
        %s575 = scalar_lea.sflag [#allocation4], %s574
        %s576 = sand.u32 %s101, 1
        %s577 = smul.addr %s576, 128
        %s578 = scalar_lea.vmem [#allocation5], %s577
        %s579 = sand.u32 %s127, 1
        %s580 = scalar_lea.sflag [#allocation7], %s579
        %s581 = sand.u32 %s127, 1
        %s582 = scalar_lea.vmem [#allocation6], %s581
        // Predicated region
        $region37: #{tpu_custom_call.1} parent=31 // pred_check
          %p583 = pneg %p111
        $region38: #{tpu_custom_call.1} parent=31 // pred_check_branch
          %585 = sbr.rel (%p583) target = $region40
        $region39: #{tpu_custom_call.1} parent=31 // pred_region
          %s587 = ssub.s32 2048, 2048
          %588 = vsyncadd %s575, %s587
          %s589 = smul.addr %s25, 16
          %s590 = smul.addr %s589, 128
          %s591 = scalar_lea.hbm %s3, %s590
          %s592 = sshll.u32 %s578, 4
          %s593 = int_to_ptr.vmem [resolvable:$true] %s592
          %598 = dma.vmem_to_hbm [thread:$0]  %s593, 2048, %s591, %s575, 256, 256, 16
        $region40: #{tpu_custom_call.1} parent=31 // pred_fallthru
          _
        // Predicated region
        $region41: #{tpu_custom_call.1} parent=31 // pred_check
          %p599 = pneg %p137
        $region42: #{tpu_custom_call.1} parent=31 // pred_check_branch
          %601 = sbr.rel (%p599) target = $region44
        $region43: #{tpu_custom_call.1} parent=31 // pred_region
          %s603 = ssub.s32 16, 16
          %604 = vsyncadd %s580, %s603
          %s605 = smul.addr %s25, 16
          %s606 = scalar_lea.hbm %s4, %s605
          %s608 = sshll.u32 %s582, 4
          %s609 = int_to_ptr.vmem [resolvable:$true] %s608
          %611 = dma.vmem_to_hbm [thread:$0]  %s609, 16, %s606, %s580
        $region44: #{tpu_custom_call.1} parent=31 // pred_fallthru
          _
      $region32: #{tpu_custom_call.1} parent=5 // pred_fallthru
        _
      %p612 = scmp.le.s32.totalorder 2, %s20
      // Predicated region
      $region45: #{tpu_custom_call.1} parent=5 // pred_check
        %p613 = pneg %p612
      $region46: #{tpu_custom_call.1} parent=5 // pred_check_branch
        %615 = sbr.rel (%p613) target = $region48
      $region47: #{tpu_custom_call.1} parent=5 // pred_region
        %s616 = ssub.s32 %s20, 2
        // Predicated region
        $region49: #{tpu_custom_call.1} parent=47 // pred_check
          %p617 = pneg %p117
        $region50: #{tpu_custom_call.1} parent=47 // pred_check_branch
          %619 = sbr.rel (%p617) target = $region52
        $region51: #{tpu_custom_call.1} parent=47 // pred_region
          %s620 = sand.u32 %s102, 1
          %s621 = scalar_lea.sflag [#allocation4], %s620
          %s622 = sand.u32 %s102, 1
          %s623 = smul.addr %s622, 128
          %s624 = scalar_lea.vmem [#allocation5], %s623
          %625 = dma.done %s621, 2048
        $region52: #{tpu_custom_call.1} parent=47 // pred_fallthru
          _
        // Predicated region
        $region53: #{tpu_custom_call.1} parent=47 // pred_check
          %p626 = pneg %p143
        $region54: #{tpu_custom_call.1} parent=47 // pred_check_branch
          %628 = sbr.rel (%p626) target = $region56
        $region55: #{tpu_custom_call.1} parent=47 // pred_region
          %s629 = sand.u32 %s128, 1
          %s630 = scalar_lea.sflag [#allocation7], %s629
          %s631 = sand.u32 %s128, 1
          %s632 = scalar_lea.vmem [#allocation6], %s631
          %633 = dma.done %s630, 16
        $region56: #{tpu_custom_call.1} parent=47 // pred_fallthru
          _
      $region48: #{tpu_custom_call.1} parent=5 // pred_fallthru
        _
    $region6: #{tpu_custom_call.1} parent=1 // loop_footer
      %s24 = sadd.s32 1, %s20
    $region7: #{tpu_custom_call.1} parent=1 // loop_footer_branch
      %19 = sbr.rel target = $region3
    $region8: #{tpu_custom_call.1} parent=1 // loop_exit
      _
    %634 = vsyncpa [#allocation3], 1
    %s635 = scalar_lea.sflag [#allocation3], 1
    %636 = vsyncpa %s635, 1
    %637 = vsyncpa [#allocation4], 1
    %s638 = scalar_lea.sflag [#allocation4], 1
    %639 = vsyncpa %s638, 1
    %640 = vsyncpa [#allocation7], 1
    %s641 = scalar_lea.sflag [#allocation7], 1
    %642 = vsyncpa %s641, 1

</llo_original>
